<compile_context>
chip_gen: v7x
topology: tpu7x:2x2x1
jax: 0.10.0
libtpu: 0.0.40
codegen_flags: <defaults>
</compile_context>

<pallas_src>
import functools

import jax
import jax.numpy as jnp
import numpy as np
from jax.experimental import pallas as pl
from jax.experimental.pallas import tpu as pltpu


def attention_kernel(x_ref, wqkv_ref, cos_ref, sin_ref, wo_ref, out_ref,
                     *, n_heads, n_kv_heads, head_dim, scale):
    rep = n_heads // n_kv_heads
    half = head_dim // 2
    d_q = n_heads * head_dim
    d_kv = n_kv_heads * head_dim

    x = x_ref[...]                                   # (rows, dim), rows = T for this block
    rows = x.shape[0]

    # Fused, lane-dense QKV projection: one matmul, output width d_q + 2*d_kv (=128 here).
    qkv = jnp.dot(x, wqkv_ref[...], preferred_element_type=jnp.float32)

    cos = cos_ref[...]                               # (rows, half) -- per-timestep rotary
    sin = sin_ref[...]

    def rope(h_block):
        # h_block: (rows, head_dim) in half-split (de-interleaved) channel order.
        r = h_block[:, :half]
        i = h_block[:, half:]
        return jnp.concatenate([r * cos - i * sin, r * sin + i * cos], axis=-1)

    q_heads = [rope(qkv[:, h * head_dim:(h + 1) * head_dim]) for h in range(n_heads)]
    k_heads = [rope(qkv[:, d_q + h * head_dim: d_q + (h + 1) * head_dim])
               for h in range(n_kv_heads)]
    v_heads = [qkv[:, d_q + d_kv + h * head_dim: d_q + d_kv + (h + 1) * head_dim]
               for h in range(n_kv_heads)]

    # Per-position attention over the head axis (repeat_interleave of kv heads folded
    # into the j // rep indexing). Statically unrolled: n_heads is tiny.
    out_heads = []
    for i in range(n_heads):
        qi = q_heads[i]
        s = jnp.concatenate(
            [jnp.sum(qi * k_heads[j // rep], axis=-1, keepdims=True) * scale
             for j in range(n_heads)], axis=-1)                      # (rows, n_heads)
        m = jnp.max(s, axis=-1, keepdims=True)
        e = jnp.exp(s - m)
        w = e / jnp.sum(e, axis=-1, keepdims=True)                   # softmax over heads
        acc = jnp.zeros((rows, head_dim), jnp.float32)
        for j in range(n_heads):
            acc = acc + w[:, j:j + 1] * v_heads[j // rep]
        out_heads.append(acc)

    wvals = jnp.concatenate(out_heads, axis=-1)                      # (rows, n_heads*head_dim)
    out_ref[...] = jnp.dot(wvals, wo_ref[...], preferred_element_type=jnp.float32)


def _deinterleave_rows(w, n_heads, head_dim):
    """Permute output channels of a (n_heads*head_dim, dim) weight so each head's
    channels become [even indices..., odd indices...] (half-split RoPE layout)."""
    idx = []
    for h in range(n_heads):
        base = h * head_dim
        idx += list(range(base, base + head_dim, 2))
        idx += list(range(base + 1, base + head_dim, 2))
    return w[np.array(idx, dtype=np.int32)]


def attention_forward(x, params, cfg):
    B, T, dim = x.shape
    n_heads = cfg["n_heads"]
    n_kv_heads = cfg["n_kv_heads"]
    head_dim = cfg["head_dim"]
    d_q = n_heads * head_dim
    d_kv = n_kv_heads * head_dim
    half = head_dim // 2
    scale = float(head_dim) ** -0.5

    # Permute q/k output channels (half-split within each head) so RoPE in the kernel
    # needs no lane-pair swaps; v and wo are untouched, so the final output is exact.
    wq_p = _deinterleave_rows(params["wq"], n_heads, head_dim)
    wk_p = _deinterleave_rows(params["wk"], n_kv_heads, head_dim)
    w_qkv = jnp.concatenate([wq_p.T, wk_p.T, params["wv"].T], axis=1)  # (dim, d_q + 2*d_kv)
    wo_t = params["wo"].T                                              # (d_q, dim)

    x2d = x.reshape(B * T, dim).astype(jnp.float32)
    cos = params["cos"].astype(jnp.float32)                            # (T, half)
    sin = params["sin"].astype(jnp.float32)

    kernel = functools.partial(attention_kernel, n_heads=n_heads,
                               n_kv_heads=n_kv_heads, head_dim=head_dim, scale=scale)

    out2d = pl.pallas_call(
        kernel,
        out_shape=jax.ShapeDtypeStruct((B * T, dim), jnp.float32),
        grid=(B,),
        in_specs=[
            pl.BlockSpec((T, dim), lambda b: (b, 0)),                  # x rows of batch b
            pl.BlockSpec((dim, d_q + 2 * d_kv), lambda b: (0, 0)),     # fused qkv weights
            pl.BlockSpec((T, half), lambda b: (0, 0)),                 # cos (same each batch)
            pl.BlockSpec((T, half), lambda b: (0, 0)),                 # sin
            pl.BlockSpec((d_q, dim), lambda b: (0, 0)),                # wo^T
        ],
        out_specs=pl.BlockSpec((T, dim), lambda b: (b, 0)),
        compiler_params=pltpu.CompilerParams(dimension_semantics=("parallel",)),
    )(x2d, w_qkv, cos, sin, wo_t)
    return out2d.reshape(B, T, dim)


# ---------------------------------------------------------------------------
# Pure-JAX reference (mirrors the PyTorch forward, incl. its head-axis attention).
# ---------------------------------------------------------------------------
def precompute_freqs(head_dim, T, theta=10000.0):
    inv = 1.0 / (theta ** (np.arange(0, head_dim, 2, dtype=np.float32) / head_dim))
    ang = np.outer(np.arange(T, dtype=np.float32), inv)                # (T, head_dim//2)
    return jnp.asarray(np.cos(ang)), jnp.asarray(np.sin(ang))


def reference_forward(x, params, cfg):
    n_heads = cfg["n_heads"]
    n_kv_heads = cfg["n_kv_heads"]
    head_dim = cfg["head_dim"]
    B, T, dim = x.shape
    rep = n_heads // n_kv_heads
    cos, sin = params["cos"], params["sin"]

    xq = (x @ params["wq"].T).reshape(B, T, n_heads, head_dim)
    xk = (x @ params["wk"].T).reshape(B, T, n_kv_heads, head_dim)
    xv = (x @ params["wv"].T).reshape(B, T, n_kv_heads, head_dim)

    def rope(t_arr):  # interleaved-pair complex multiply, as torch.view_as_complex does
        tr = t_arr[..., 0::2]
        ti = t_arr[..., 1::2]
        c = cos[None, :, None, :]
        s = sin[None, :, None, :]
        out_r = tr * c - ti * s
        out_i = tr * s + ti * c
        return jnp.stack([out_r, out_i], axis=-1).reshape(t_arr.shape)

    xq = rope(xq)
    xk = rope(xk)
    keys = jnp.repeat(xk, rep, axis=2)        # torch.repeat_interleave(dim=2)
    vals = jnp.repeat(xv, rep, axis=2)
    scores = jnp.einsum('btid,btjd->btij', xq, keys) * (float(head_dim) ** -0.5)
    w = jax.nn.softmax(scores, axis=-1)
    wv = jnp.einsum('btij,btjd->btid', w, vals).reshape(B, T, n_heads * head_dim)
    return wv @ params["wo"].T


if __name__ == "__main__":
    cfg = dict(dim=32, n_heads=4, n_kv_heads=2, head_dim=16, context_length=8)
    B, T = 2, cfg["context_length"]
    dim = cfg["dim"]
    d_q = cfg["n_heads"] * cfg["head_dim"]
    d_kv = cfg["n_kv_heads"] * cfg["head_dim"]

    key = jax.random.PRNGKey(0)
    kx, kq, kk, kv, ko = jax.random.split(key, 5)
    s_in = 1.0 / np.sqrt(dim)
    s_out = 1.0 / np.sqrt(d_q)
    params = dict(
        wq=jax.random.uniform(kq, (d_q, dim), jnp.float32, -s_in, s_in),
        wk=jax.random.uniform(kk, (d_kv, dim), jnp.float32, -s_in, s_in),
        wv=jax.random.uniform(kv, (d_kv, dim), jnp.float32, -s_in, s_in),
        wo=jax.random.uniform(ko, (dim, d_q), jnp.float32, -s_out, s_out),
    )
    cos, sin = precompute_freqs(cfg["head_dim"], T)
    params["cos"] = cos
    params["sin"] = sin

    x = jax.random.normal(kx, (B, T, dim), jnp.float32)

    out = attention_forward(x, params, cfg)
    out = jax.block_until_ready(out)

    ref = reference_forward(x, params, cfg)
    np.testing.assert_allclose(np.asarray(out), np.asarray(ref), rtol=2e-2, atol=2e-2)
    print("KERNEL_OK")
</pallas_src>

<mosaic_0001>
module attributes {stable_mosaic.version = 11 : i64} {
  func.func @attention_kernel(%arg0: i32, %arg1: memref<8x32xf32, #tpu.memory_space<vmem>>, %arg2: memref<32x128xf32, #tpu.memory_space<vmem>>, %arg3: memref<8x8xf32, #tpu.memory_space<vmem>>, %arg4: memref<8x8xf32, #tpu.memory_space<vmem>>, %arg5: memref<64x32xf32, #tpu.memory_space<vmem>>, %arg6: memref<8x32xf32, #tpu.memory_space<vmem>>) attributes {dimension_semantics = [#tpu.dimension_semantics<parallel>], iteration_bounds = array<i64: 2>, scalar_prefetch = 0 : i64, scratch_operands = 0 : i64, tpu.core_type = #tpu.core_type<tc>, window_params = [{transform_indices = @transform_0, window_bounds = array<i64: 8, 32>}, {pipeline_mode = #tpu.pipeline_mode<synchronous>, transform_indices = @transform_1, window_bounds = array<i64: 32, 128>}, {pipeline_mode = #tpu.pipeline_mode<synchronous>, transform_indices = @transform_2, window_bounds = array<i64: 8, 8>}, {pipeline_mode = #tpu.pipeline_mode<synchronous>, transform_indices = @transform_3, window_bounds = array<i64: 8, 8>}, {pipeline_mode = #tpu.pipeline_mode<synchronous>, transform_indices = @transform_4, window_bounds = array<i64: 64, 32>}, {transform_indices = @transform_5, window_bounds = array<i64: 8, 32>}]} {
    %c0 = arith.constant 0 : index
    %c0_0 = arith.constant 0 : index
    %0 = vector.load %arg1[%c0, %c0_0] : memref<8x32xf32, #tpu.memory_space<vmem>>, vector<8x32xf32>
    %c0_1 = arith.constant 0 : index
    %c0_2 = arith.constant 0 : index
    %1 = vector.load %arg2[%c0_1, %c0_2] : memref<32x128xf32, #tpu.memory_space<vmem>>, vector<32x128xf32>
    %cst = arith.constant dense<0.000000e+00> : vector<8x128xf32>
    %2 = tpu.matmul %0, %1, %cst {dimension_numbers = #tpu.dot_dimension_numbers<[1], [0], [0], [1], [0, 0, 1, 1], [], []>} : vector<8x32xf32>, vector<32x128xf32>, vector<8x128xf32> -> vector<8x128xf32>
    %c0_3 = arith.constant 0 : index
    %c0_4 = arith.constant 0 : index
    %3 = vector.load %arg3[%c0_3, %c0_4] : memref<8x8xf32, #tpu.memory_space<vmem>>, vector<8x8xf32>
    %c0_5 = arith.constant 0 : index
    %c0_6 = arith.constant 0 : index
    %4 = vector.load %arg4[%c0_5, %c0_6] : memref<8x8xf32, #tpu.memory_space<vmem>>, vector<8x8xf32>
    %5 = vector.extract_strided_slice %2 {offsets = [0, 0], sizes = [8, 16], strides = [1, 1]} : vector<8x128xf32> to vector<8x16xf32>
    %6 = vector.extract_strided_slice %5 {offsets = [0, 0], sizes = [8, 8], strides = [1, 1]} : vector<8x16xf32> to vector<8x8xf32>
    %7 = vector.extract_strided_slice %5 {offsets = [0, 8], sizes = [8, 8], strides = [1, 1]} : vector<8x16xf32> to vector<8x8xf32>
    %8 = arith.mulf %6, %3 : vector<8x8xf32>
    %9 = arith.mulf %7, %4 : vector<8x8xf32>
    %10 = arith.subf %8, %9 : vector<8x8xf32>
    %11 = arith.mulf %6, %4 : vector<8x8xf32>
    %12 = arith.mulf %7, %3 : vector<8x8xf32>
    %13 = arith.addf %11, %12 : vector<8x8xf32>
    %14 = tpu.concatenate %10, %13 in 1 : vector<8x8xf32>, vector<8x8xf32> -> vector<8x16xf32>
    %15 = vector.extract_strided_slice %2 {offsets = [0, 16], sizes = [8, 16], strides = [1, 1]} : vector<8x128xf32> to vector<8x16xf32>
    %16 = vector.extract_strided_slice %15 {offsets = [0, 0], sizes = [8, 8], strides = [1, 1]} : vector<8x16xf32> to vector<8x8xf32>
    %17 = vector.extract_strided_slice %15 {offsets = [0, 8], sizes = [8, 8], strides = [1, 1]} : vector<8x16xf32> to vector<8x8xf32>
    %18 = arith.mulf %16, %3 : vector<8x8xf32>
    %19 = arith.mulf %17, %4 : vector<8x8xf32>
    %20 = arith.subf %18, %19 : vector<8x8xf32>
    %21 = arith.mulf %16, %4 : vector<8x8xf32>
    %22 = arith.mulf %17, %3 : vector<8x8xf32>
    %23 = arith.addf %21, %22 : vector<8x8xf32>
    %24 = tpu.concatenate %20, %23 in 1 : vector<8x8xf32>, vector<8x8xf32> -> vector<8x16xf32>
    %25 = vector.extract_strided_slice %2 {offsets = [0, 32], sizes = [8, 16], strides = [1, 1]} : vector<8x128xf32> to vector<8x16xf32>
    %26 = vector.extract_strided_slice %25 {offsets = [0, 0], sizes = [8, 8], strides = [1, 1]} : vector<8x16xf32> to vector<8x8xf32>
    %27 = vector.extract_strided_slice %25 {offsets = [0, 8], sizes = [8, 8], strides = [1, 1]} : vector<8x16xf32> to vector<8x8xf32>
    %28 = arith.mulf %26, %3 : vector<8x8xf32>
    %29 = arith.mulf %27, %4 : vector<8x8xf32>
    %30 = arith.subf %28, %29 : vector<8x8xf32>
    %31 = arith.mulf %26, %4 : vector<8x8xf32>
    %32 = arith.mulf %27, %3 : vector<8x8xf32>
    %33 = arith.addf %31, %32 : vector<8x8xf32>
    %34 = tpu.concatenate %30, %33 in 1 : vector<8x8xf32>, vector<8x8xf32> -> vector<8x16xf32>
    %35 = vector.extract_strided_slice %2 {offsets = [0, 48], sizes = [8, 16], strides = [1, 1]} : vector<8x128xf32> to vector<8x16xf32>
    %36 = vector.extract_strided_slice %35 {offsets = [0, 0], sizes = [8, 8], strides = [1, 1]} : vector<8x16xf32> to vector<8x8xf32>
    %37 = vector.extract_strided_slice %35 {offsets = [0, 8], sizes = [8, 8], strides = [1, 1]} : vector<8x16xf32> to vector<8x8xf32>
    %38 = arith.mulf %36, %3 : vector<8x8xf32>
    %39 = arith.mulf %37, %4 : vector<8x8xf32>
    %40 = arith.subf %38, %39 : vector<8x8xf32>
    %41 = arith.mulf %36, %4 : vector<8x8xf32>
    %42 = arith.mulf %37, %3 : vector<8x8xf32>
    %43 = arith.addf %41, %42 : vector<8x8xf32>
    %44 = tpu.concatenate %40, %43 in 1 : vector<8x8xf32>, vector<8x8xf32> -> vector<8x16xf32>
    %45 = vector.extract_strided_slice %2 {offsets = [0, 64], sizes = [8, 16], strides = [1, 1]} : vector<8x128xf32> to vector<8x16xf32>
    %46 = vector.extract_strided_slice %45 {offsets = [0, 0], sizes = [8, 8], strides = [1, 1]} : vector<8x16xf32> to vector<8x8xf32>
    %47 = vector.extract_strided_slice %45 {offsets = [0, 8], sizes = [8, 8], strides = [1, 1]} : vector<8x16xf32> to vector<8x8xf32>
    %48 = arith.mulf %46, %3 : vector<8x8xf32>
    %49 = arith.mulf %47, %4 : vector<8x8xf32>
    %50 = arith.subf %48, %49 : vector<8x8xf32>
    %51 = arith.mulf %46, %4 : vector<8x8xf32>
    %52 = arith.mulf %47, %3 : vector<8x8xf32>
    %53 = arith.addf %51, %52 : vector<8x8xf32>
    %54 = tpu.concatenate %50, %53 in 1 : vector<8x8xf32>, vector<8x8xf32> -> vector<8x16xf32>
    %55 = vector.extract_strided_slice %2 {offsets = [0, 80], sizes = [8, 16], strides = [1, 1]} : vector<8x128xf32> to vector<8x16xf32>
    %56 = vector.extract_strided_slice %55 {offsets = [0, 0], sizes = [8, 8], strides = [1, 1]} : vector<8x16xf32> to vector<8x8xf32>
    %57 = vector.extract_strided_slice %55 {offsets = [0, 8], sizes = [8, 8], strides = [1, 1]} : vector<8x16xf32> to vector<8x8xf32>
    %58 = arith.mulf %56, %3 : vector<8x8xf32>
    %59 = arith.mulf %57, %4 : vector<8x8xf32>
    %60 = arith.subf %58, %59 : vector<8x8xf32>
    %61 = arith.mulf %56, %4 : vector<8x8xf32>
    %62 = arith.mulf %57, %3 : vector<8x8xf32>
    %63 = arith.addf %61, %62 : vector<8x8xf32>
    %64 = tpu.concatenate %60, %63 in 1 : vector<8x8xf32>, vector<8x8xf32> -> vector<8x16xf32>
    %65 = vector.extract_strided_slice %2 {offsets = [0, 96], sizes = [8, 16], strides = [1, 1]} : vector<8x128xf32> to vector<8x16xf32>
    %66 = vector.extract_strided_slice %2 {offsets = [0, 112], sizes = [8, 16], strides = [1, 1]} : vector<8x128xf32> to vector<8x16xf32>
    %67 = arith.mulf %14, %54 : vector<8x16xf32>
    %cst_7 = arith.constant dense<0.000000e+00> : vector<8xf32>
    %68 = vector.multi_reduction <add>, %67, %cst_7 [1] : vector<8x16xf32> to vector<8xf32>
    %69 = vector.shape_cast %68 : vector<8xf32> to vector<8x1xf32>
    %cst_8 = arith.constant 2.500000e-01 : f32
    %70 = vector.broadcast %cst_8 : f32 to vector<8x1xf32>
    %71 = arith.mulf %69, %70 : vector<8x1xf32>
    %72 = arith.mulf %14, %54 : vector<8x16xf32>
    %cst_9 = arith.constant dense<0.000000e+00> : vector<8xf32>
    %73 = vector.multi_reduction <add>, %72, %cst_9 [1] : vector<8x16xf32> to vector<8xf32>
    %74 = vector.shape_cast %73 : vector<8xf32> to vector<8x1xf32>
    %cst_10 = arith.constant 2.500000e-01 : f32
    %75 = vector.broadcast %cst_10 : f32 to vector<8x1xf32>
    %76 = arith.mulf %74, %75 : vector<8x1xf32>
    %77 = arith.mulf %14, %64 : vector<8x16xf32>
    %cst_11 = arith.constant dense<0.000000e+00> : vector<8xf32>
    %78 = vector.multi_reduction <add>, %77, %cst_11 [1] : vector<8x16xf32> to vector<8xf32>
    %79 = vector.shape_cast %78 : vector<8xf32> to vector<8x1xf32>
    %cst_12 = arith.constant 2.500000e-01 : f32
    %80 = vector.broadcast %cst_12 : f32 to vector<8x1xf32>
    %81 = arith.mulf %79, %80 : vector<8x1xf32>
    %82 = arith.mulf %14, %64 : vector<8x16xf32>
    %cst_13 = arith.constant dense<0.000000e+00> : vector<8xf32>
    %83 = vector.multi_reduction <add>, %82, %cst_13 [1] : vector<8x16xf32> to vector<8xf32>
    %84 = vector.shape_cast %83 : vector<8xf32> to vector<8x1xf32>
    %cst_14 = arith.constant 2.500000e-01 : f32
    %85 = vector.broadcast %cst_14 : f32 to vector<8x1xf32>
    %86 = arith.mulf %84, %85 : vector<8x1xf32>
    %87 = tpu.concatenate %71, %76, %81, %86 in 1 : vector<8x1xf32>, vector<8x1xf32>, vector<8x1xf32>, vector<8x1xf32> -> vector<8x4xf32>
    %cst_15 = arith.constant dense<0xFF800000> : vector<8xf32>
    %88 = vector.multi_reduction <maximumf>, %87, %cst_15 [1] : vector<8x4xf32> to vector<8xf32>
    %89 = vector.shape_cast %88 : vector<8xf32> to vector<8x1xf32>
    %90 = vector.broadcast %89 : vector<8x1xf32> to vector<8x4xf32>
    %91 = arith.subf %87, %90 : vector<8x4xf32>
    %92 = math.exp %91 : vector<8x4xf32>
    %cst_16 = arith.constant dense<0.000000e+00> : vector<8xf32>
    %93 = vector.multi_reduction <add>, %92, %cst_16 [1] : vector<8x4xf32> to vector<8xf32>
    %94 = vector.shape_cast %93 : vector<8xf32> to vector<8x1xf32>
    %95 = vector.broadcast %94 : vector<8x1xf32> to vector<8x4xf32>
    %96 = arith.divf %92, %95 : vector<8x4xf32>
    %cst_17 = arith.constant 0.000000e+00 : f32
    %97 = vector.broadcast %cst_17 : f32 to vector<8x16xf32>
    %98 = vector.extract_strided_slice %96 {offsets = [0, 0], sizes = [8, 1], strides = [1, 1]} : vector<8x4xf32> to vector<8x1xf32>
    %99 = vector.broadcast %98 : vector<8x1xf32> to vector<8x16xf32>
    %100 = arith.mulf %99, %65 : vector<8x16xf32>
    %101 = arith.addf %97, %100 : vector<8x16xf32>
    %102 = vector.extract_strided_slice %96 {offsets = [0, 1], sizes = [8, 1], strides = [1, 1]} : vector<8x4xf32> to vector<8x1xf32>
    %103 = vector.broadcast %102 : vector<8x1xf32> to vector<8x16xf32>
    %104 = arith.mulf %103, %65 : vector<8x16xf32>
    %105 = arith.addf %101, %104 : vector<8x16xf32>
    %106 = vector.extract_strided_slice %96 {offsets = [0, 2], sizes = [8, 1], strides = [1, 1]} : vector<8x4xf32> to vector<8x1xf32>
    %107 = vector.broadcast %106 : vector<8x1xf32> to vector<8x16xf32>
    %108 = arith.mulf %107, %66 : vector<8x16xf32>
    %109 = arith.addf %105, %108 : vector<8x16xf32>
    %110 = vector.extract_strided_slice %96 {offsets = [0, 3], sizes = [8, 1], strides = [1, 1]} : vector<8x4xf32> to vector<8x1xf32>
    %111 = vector.broadcast %110 : vector<8x1xf32> to vector<8x16xf32>
    %112 = arith.mulf %111, %66 : vector<8x16xf32>
    %113 = arith.addf %109, %112 : vector<8x16xf32>
    %114 = arith.mulf %24, %54 : vector<8x16xf32>
    %cst_18 = arith.constant dense<0.000000e+00> : vector<8xf32>
    %115 = vector.multi_reduction <add>, %114, %cst_18 [1] : vector<8x16xf32> to vector<8xf32>
    %116 = vector.shape_cast %115 : vector<8xf32> to vector<8x1xf32>
    %cst_19 = arith.constant 2.500000e-01 : f32
    %117 = vector.broadcast %cst_19 : f32 to vector<8x1xf32>
    %118 = arith.mulf %116, %117 : vector<8x1xf32>
    %119 = arith.mulf %24, %54 : vector<8x16xf32>
    %cst_20 = arith.constant dense<0.000000e+00> : vector<8xf32>
    %120 = vector.multi_reduction <add>, %119, %cst_20 [1] : vector<8x16xf32> to vector<8xf32>
    %121 = vector.shape_cast %120 : vector<8xf32> to vector<8x1xf32>
    %cst_21 = arith.constant 2.500000e-01 : f32
    %122 = vector.broadcast %cst_21 : f32 to vector<8x1xf32>
    %123 = arith.mulf %121, %122 : vector<8x1xf32>
    %124 = arith.mulf %24, %64 : vector<8x16xf32>
    %cst_22 = arith.constant dense<0.000000e+00> : vector<8xf32>
    %125 = vector.multi_reduction <add>, %124, %cst_22 [1] : vector<8x16xf32> to vector<8xf32>
    %126 = vector.shape_cast %125 : vector<8xf32> to vector<8x1xf32>
    %cst_23 = arith.constant 2.500000e-01 : f32
    %127 = vector.broadcast %cst_23 : f32 to vector<8x1xf32>
    %128 = arith.mulf %126, %127 : vector<8x1xf32>
    %129 = arith.mulf %24, %64 : vector<8x16xf32>
    %cst_24 = arith.constant dense<0.000000e+00> : vector<8xf32>
    %130 = vector.multi_reduction <add>, %129, %cst_24 [1] : vector<8x16xf32> to vector<8xf32>
    %131 = vector.shape_cast %130 : vector<8xf32> to vector<8x1xf32>
    %cst_25 = arith.constant 2.500000e-01 : f32
    %132 = vector.broadcast %cst_25 : f32 to vector<8x1xf32>
    %133 = arith.mulf %131, %132 : vector<8x1xf32>
    %134 = tpu.concatenate %118, %123, %128, %133 in 1 : vector<8x1xf32>, vector<8x1xf32>, vector<8x1xf32>, vector<8x1xf32> -> vector<8x4xf32>
    %cst_26 = arith.constant dense<0xFF800000> : vector<8xf32>
    %135 = vector.multi_reduction <maximumf>, %134, %cst_26 [1] : vector<8x4xf32> to vector<8xf32>
    %136 = vector.shape_cast %135 : vector<8xf32> to vector<8x1xf32>
    %137 = vector.broadcast %136 : vector<8x1xf32> to vector<8x4xf32>
    %138 = arith.subf %134, %137 : vector<8x4xf32>
    %139 = math.exp %138 : vector<8x4xf32>
    %cst_27 = arith.constant dense<0.000000e+00> : vector<8xf32>
    %140 = vector.multi_reduction <add>, %139, %cst_27 [1] : vector<8x4xf32> to vector<8xf32>
    %141 = vector.shape_cast %140 : vector<8xf32> to vector<8x1xf32>
    %142 = vector.broadcast %141 : vector<8x1xf32> to vector<8x4xf32>
    %143 = arith.divf %139, %142 : vector<8x4xf32>
    %cst_28 = arith.constant 0.000000e+00 : f32
    %144 = vector.broadcast %cst_28 : f32 to vector<8x16xf32>
    %145 = vector.extract_strided_slice %143 {offsets = [0, 0], sizes = [8, 1], strides = [1, 1]} : vector<8x4xf32> to vector<8x1xf32>
    %146 = vector.broadcast %145 : vector<8x1xf32> to vector<8x16xf32>
    %147 = arith.mulf %146, %65 : vector<8x16xf32>
    %148 = arith.addf %144, %147 : vector<8x16xf32>
    %149 = vector.extract_strided_slice %143 {offsets = [0, 1], sizes = [8, 1], strides = [1, 1]} : vector<8x4xf32> to vector<8x1xf32>
    %150 = vector.broadcast %149 : vector<8x1xf32> to vector<8x16xf32>
    %151 = arith.mulf %150, %65 : vector<8x16xf32>
    %152 = arith.addf %148, %151 : vector<8x16xf32>
    %153 = vector.extract_strided_slice %143 {offsets = [0, 2], sizes = [8, 1], strides = [1, 1]} : vector<8x4xf32> to vector<8x1xf32>
    %154 = vector.broadcast %153 : vector<8x1xf32> to vector<8x16xf32>
    %155 = arith.mulf %154, %66 : vector<8x16xf32>
    %156 = arith.addf %152, %155 : vector<8x16xf32>
    %157 = vector.extract_strided_slice %143 {offsets = [0, 3], sizes = [8, 1], strides = [1, 1]} : vector<8x4xf32> to vector<8x1xf32>
    %158 = vector.broadcast %157 : vector<8x1xf32> to vector<8x16xf32>
    %159 = arith.mulf %158, %66 : vector<8x16xf32>
    %160 = arith.addf %156, %159 : vector<8x16xf32>
    %161 = arith.mulf %34, %54 : vector<8x16xf32>
    %cst_29 = arith.constant dense<0.000000e+00> : vector<8xf32>
    %162 = vector.multi_reduction <add>, %161, %cst_29 [1] : vector<8x16xf32> to vector<8xf32>
    %163 = vector.shape_cast %162 : vector<8xf32> to vector<8x1xf32>
    %cst_30 = arith.constant 2.500000e-01 : f32
    %164 = vector.broadcast %cst_30 : f32 to vector<8x1xf32>
    %165 = arith.mulf %163, %164 : vector<8x1xf32>
    %166 = arith.mulf %34, %54 : vector<8x16xf32>
    %cst_31 = arith.constant dense<0.000000e+00> : vector<8xf32>
    %167 = vector.multi_reduction <add>, %166, %cst_31 [1] : vector<8x16xf32> to vector<8xf32>
    %168 = vector.shape_cast %167 : vector<8xf32> to vector<8x1xf32>
    %cst_32 = arith.constant 2.500000e-01 : f32
    %169 = vector.broadcast %cst_32 : f32 to vector<8x1xf32>
    %170 = arith.mulf %168, %169 : vector<8x1xf32>
    %171 = arith.mulf %34, %64 : vector<8x16xf32>
    %cst_33 = arith.constant dense<0.000000e+00> : vector<8xf32>
    %172 = vector.multi_reduction <add>, %171, %cst_33 [1] : vector<8x16xf32> to vector<8xf32>
    %173 = vector.shape_cast %172 : vector<8xf32> to vector<8x1xf32>
    %cst_34 = arith.constant 2.500000e-01 : f32
    %174 = vector.broadcast %cst_34 : f32 to vector<8x1xf32>
    %175 = arith.mulf %173, %174 : vector<8x1xf32>
    %176 = arith.mulf %34, %64 : vector<8x16xf32>
    %cst_35 = arith.constant dense<0.000000e+00> : vector<8xf32>
    %177 = vector.multi_reduction <add>, %176, %cst_35 [1] : vector<8x16xf32> to vector<8xf32>
    %178 = vector.shape_cast %177 : vector<8xf32> to vector<8x1xf32>
    %cst_36 = arith.constant 2.500000e-01 : f32
    %179 = vector.broadcast %cst_36 : f32 to vector<8x1xf32>
    %180 = arith.mulf %178, %179 : vector<8x1xf32>
    %181 = tpu.concatenate %165, %170, %175, %180 in 1 : vector<8x1xf32>, vector<8x1xf32>, vector<8x1xf32>, vector<8x1xf32> -> vector<8x4xf32>
    %cst_37 = arith.constant dense<0xFF800000> : vector<8xf32>
    %182 = vector.multi_reduction <maximumf>, %181, %cst_37 [1] : vector<8x4xf32> to vector<8xf32>
    %183 = vector.shape_cast %182 : vector<8xf32> to vector<8x1xf32>
    %184 = vector.broadcast %183 : vector<8x1xf32> to vector<8x4xf32>
    %185 = arith.subf %181, %184 : vector<8x4xf32>
    %186 = math.exp %185 : vector<8x4xf32>
    %cst_38 = arith.constant dense<0.000000e+00> : vector<8xf32>
    %187 = vector.multi_reduction <add>, %186, %cst_38 [1] : vector<8x4xf32> to vector<8xf32>
    %188 = vector.shape_cast %187 : vector<8xf32> to vector<8x1xf32>
    %189 = vector.broadcast %188 : vector<8x1xf32> to vector<8x4xf32>
    %190 = arith.divf %186, %189 : vector<8x4xf32>
    %cst_39 = arith.constant 0.000000e+00 : f32
    %191 = vector.broadcast %cst_39 : f32 to vector<8x16xf32>
    %192 = vector.extract_strided_slice %190 {offsets = [0, 0], sizes = [8, 1], strides = [1, 1]} : vector<8x4xf32> to vector<8x1xf32>
    %193 = vector.broadcast %192 : vector<8x1xf32> to vector<8x16xf32>
    %194 = arith.mulf %193, %65 : vector<8x16xf32>
    %195 = arith.addf %191, %194 : vector<8x16xf32>
    %196 = vector.extract_strided_slice %190 {offsets = [0, 1], sizes = [8, 1], strides = [1, 1]} : vector<8x4xf32> to vector<8x1xf32>
    %197 = vector.broadcast %196 : vector<8x1xf32> to vector<8x16xf32>
    %198 = arith.mulf %197, %65 : vector<8x16xf32>
    %199 = arith.addf %195, %198 : vector<8x16xf32>
    %200 = vector.extract_strided_slice %190 {offsets = [0, 2], sizes = [8, 1], strides = [1, 1]} : vector<8x4xf32> to vector<8x1xf32>
    %201 = vector.broadcast %200 : vector<8x1xf32> to vector<8x16xf32>
    %202 = arith.mulf %201, %66 : vector<8x16xf32>
    %203 = arith.addf %199, %202 : vector<8x16xf32>
    %204 = vector.extract_strided_slice %190 {offsets = [0, 3], sizes = [8, 1], strides = [1, 1]} : vector<8x4xf32> to vector<8x1xf32>
    %205 = vector.broadcast %204 : vector<8x1xf32> to vector<8x16xf32>
    %206 = arith.mulf %205, %66 : vector<8x16xf32>
    %207 = arith.addf %203, %206 : vector<8x16xf32>
    %208 = arith.mulf %44, %54 : vector<8x16xf32>
    %cst_40 = arith.constant dense<0.000000e+00> : vector<8xf32>
    %209 = vector.multi_reduction <add>, %208, %cst_40 [1] : vector<8x16xf32> to vector<8xf32>
    %210 = vector.shape_cast %209 : vector<8xf32> to vector<8x1xf32>
    %cst_41 = arith.constant 2.500000e-01 : f32
    %211 = vector.broadcast %cst_41 : f32 to vector<8x1xf32>
    %212 = arith.mulf %210, %211 : vector<8x1xf32>
    %213 = arith.mulf %44, %54 : vector<8x16xf32>
    %cst_42 = arith.constant dense<0.000000e+00> : vector<8xf32>
    %214 = vector.multi_reduction <add>, %213, %cst_42 [1] : vector<8x16xf32> to vector<8xf32>
    %215 = vector.shape_cast %214 : vector<8xf32> to vector<8x1xf32>
    %cst_43 = arith.constant 2.500000e-01 : f32
    %216 = vector.broadcast %cst_43 : f32 to vector<8x1xf32>
    %217 = arith.mulf %215, %216 : vector<8x1xf32>
    %218 = arith.mulf %44, %64 : vector<8x16xf32>
    %cst_44 = arith.constant dense<0.000000e+00> : vector<8xf32>
    %219 = vector.multi_reduction <add>, %218, %cst_44 [1] : vector<8x16xf32> to vector<8xf32>
    %220 = vector.shape_cast %219 : vector<8xf32> to vector<8x1xf32>
    %cst_45 = arith.constant 2.500000e-01 : f32
    %221 = vector.broadcast %cst_45 : f32 to vector<8x1xf32>
    %222 = arith.mulf %220, %221 : vector<8x1xf32>
    %223 = arith.mulf %44, %64 : vector<8x16xf32>
    %cst_46 = arith.constant dense<0.000000e+00> : vector<8xf32>
    %224 = vector.multi_reduction <add>, %223, %cst_46 [1] : vector<8x16xf32> to vector<8xf32>
    %225 = vector.shape_cast %224 : vector<8xf32> to vector<8x1xf32>
    %cst_47 = arith.constant 2.500000e-01 : f32
    %226 = vector.broadcast %cst_47 : f32 to vector<8x1xf32>
    %227 = arith.mulf %225, %226 : vector<8x1xf32>
    %228 = tpu.concatenate %212, %217, %222, %227 in 1 : vector<8x1xf32>, vector<8x1xf32>, vector<8x1xf32>, vector<8x1xf32> -> vector<8x4xf32>
    %cst_48 = arith.constant dense<0xFF800000> : vector<8xf32>
    %229 = vector.multi_reduction <maximumf>, %228, %cst_48 [1] : vector<8x4xf32> to vector<8xf32>
    %230 = vector.shape_cast %229 : vector<8xf32> to vector<8x1xf32>
    %231 = vector.broadcast %230 : vector<8x1xf32> to vector<8x4xf32>
    %232 = arith.subf %228, %231 : vector<8x4xf32>
    %233 = math.exp %232 : vector<8x4xf32>
    %cst_49 = arith.constant dense<0.000000e+00> : vector<8xf32>
    %234 = vector.multi_reduction <add>, %233, %cst_49 [1] : vector<8x4xf32> to vector<8xf32>
    %235 = vector.shape_cast %234 : vector<8xf32> to vector<8x1xf32>
    %236 = vector.broadcast %235 : vector<8x1xf32> to vector<8x4xf32>
    %237 = arith.divf %233, %236 : vector<8x4xf32>
    %cst_50 = arith.constant 0.000000e+00 : f32
    %238 = vector.broadcast %cst_50 : f32 to vector<8x16xf32>
    %239 = vector.extract_strided_slice %237 {offsets = [0, 0], sizes = [8, 1], strides = [1, 1]} : vector<8x4xf32> to vector<8x1xf32>
    %240 = vector.broadcast %239 : vector<8x1xf32> to vector<8x16xf32>
    %241 = arith.mulf %240, %65 : vector<8x16xf32>
    %242 = arith.addf %238, %241 : vector<8x16xf32>
    %243 = vector.extract_strided_slice %237 {offsets = [0, 1], sizes = [8, 1], strides = [1, 1]} : vector<8x4xf32> to vector<8x1xf32>
    %244 = vector.broadcast %243 : vector<8x1xf32> to vector<8x16xf32>
    %245 = arith.mulf %244, %65 : vector<8x16xf32>
    %246 = arith.addf %242, %245 : vector<8x16xf32>
    %247 = vector.extract_strided_slice %237 {offsets = [0, 2], sizes = [8, 1], strides = [1, 1]} : vector<8x4xf32> to vector<8x1xf32>
    %248 = vector.broadcast %247 : vector<8x1xf32> to vector<8x16xf32>
    %249 = arith.mulf %248, %66 : vector<8x16xf32>
    %250 = arith.addf %246, %249 : vector<8x16xf32>
    %251 = vector.extract_strided_slice %237 {offsets = [0, 3], sizes = [8, 1], strides = [1, 1]} : vector<8x4xf32> to vector<8x1xf32>
    %252 = vector.broadcast %251 : vector<8x1xf32> to vector<8x16xf32>
    %253 = arith.mulf %252, %66 : vector<8x16xf32>
    %254 = arith.addf %250, %253 : vector<8x16xf32>
    %255 = tpu.concatenate %113, %160, %207, %254 in 1 : vector<8x16xf32>, vector<8x16xf32>, vector<8x16xf32>, vector<8x16xf32> -> vector<8x64xf32>
    %c0_51 = arith.constant 0 : index
    %c0_52 = arith.constant 0 : index
    %256 = vector.load %arg5[%c0_51, %c0_52] : memref<64x32xf32, #tpu.memory_space<vmem>>, vector<64x32xf32>
    %cst_53 = arith.constant dense<0.000000e+00> : vector<8x32xf32>
    %257 = tpu.matmul %255, %256, %cst_53 {dimension_numbers = #tpu.dot_dimension_numbers<[1], [0], [0], [1], [0, 0, 1, 1], [], []>} : vector<8x64xf32>, vector<64x32xf32>, vector<8x32xf32> -> vector<8x32xf32>
    %c0_54 = arith.constant 0 : index
    %c0_55 = arith.constant 0 : index
    %258 = vector.load %arg6[%c0_54, %c0_55] : memref<8x32xf32, #tpu.memory_space<vmem>>, vector<8x32xf32>
    tpu.vector_store %arg6[%c0_54, %c0_55], %257 {strides = array<i32>} : memref<8x32xf32, #tpu.memory_space<vmem>>, vector<8x32xf32>,
    return
  }
  func.func @transform_0(%arg0: i32) -> (i32, i32) {
    %c0_i32 = arith.constant 0 : i32
    %c0_i32_0 = arith.constant 0 : i32
    return %arg0, %c0_i32 : i32, i32
  }
  func.func @transform_1(%arg0: i32) -> (i32, i32) {
    %c0_i32 = arith.constant 0 : i32
    %c0_i32_0 = arith.constant 0 : i32
    %c0_i32_1 = arith.constant 0 : i32
    return %c0_i32, %c0_i32_0 : i32, i32
  }
  func.func @transform_2(%arg0: i32) -> (i32, i32) {
    %c0_i32 = arith.constant 0 : i32
    %c0_i32_0 = arith.constant 0 : i32
    %c0_i32_1 = arith.constant 0 : i32
    return %c0_i32, %c0_i32_0 : i32, i32
  }
  func.func @transform_3(%arg0: i32) -> (i32, i32) {
    %c0_i32 = arith.constant 0 : i32
    %c0_i32_0 = arith.constant 0 : i32
    %c0_i32_1 = arith.constant 0 : i32
    return %c0_i32, %c0_i32_0 : i32, i32
  }
  func.func @transform_4(%arg0: i32) -> (i32, i32) {
    %c0_i32 = arith.constant 0 : i32
    %c0_i32_0 = arith.constant 0 : i32
    %c0_i32_1 = arith.constant 0 : i32
    return %c0_i32, %c0_i32_0 : i32, i32
  }
  func.func @transform_5(%arg0: i32) -> (i32, i32) {
    %c0_i32 = arith.constant 0 : i32
    %c0_i32_0 = arith.constant 0 : i32
    return %arg0, %c0_i32 : i32, i32
  }
}

</mosaic_0001>

<llo_original>
// kernel: tpu_custom_call.1
$region0: #{tpu_custom_call.1}
  #allocation0 [shape = 'u32[]', space=smem, size = 0x4, offset = 0x4, fixed_abs, tag = 'smem constant byte address 0x4 - core index']
  #allocation1 [shape = 'u32[144,128]{1,0:T(1,128)}', space=vmem, size = 0x12000, scoped, tag = 'internal scratch']
  %s0 = inlined_call_operand.vmem [shape: f32[16,32], index: 0, kind: input, shape index: {}]
  %s1 = inlined_call_operand.vmem [shape: f32[32,128], index: 1, kind: input, shape index: {}]
  %s2 = inlined_call_operand.vmem [shape: f32[8,8], index: 2, kind: input, shape index: {}]
  %s3 = inlined_call_operand.vmem [shape: f32[8,8], index: 3, kind: input, shape index: {}]
  %s4 = inlined_call_operand.vmem [shape: f32[64,32], index: 4, kind: input, shape index: {}]
  %s5 = inlined_call_operand.hbm [shape: f32[16,32], index: 5, kind: output, shape index: {}]
  %s6 = sld [smem:[#allocation0]]
  $region53: #{tpu_custom_call.1} parent=0
    _
  %s8 = ssub.s32 1, %s6
  %s9 = scalar_select 0, %s8, %s6
  $region1: #{tpu_custom_call.1} parent=0
    #allocation2 [shape = 'u8[8192]{0}', space=vmem, size = 0x2000, scoped, tag = 'output window, operand 0']
    #allocation3 [shape = 's32[2]{0}', space=sflag, size = 0x8, scoped, tag = 'scoped memory for tpu_custom_call.1']
    %10 = vsyncpa [#allocation3], 0
    %s11 = scalar_lea.sflag [#allocation3], 1
    %12 = vsyncpa %s11, 0
    loop: start=0, step=1, limit=4
    $region2: #{tpu_custom_call.1} parent=1 // loop_pre_header
      _
    $region3: #{tpu_custom_call.1} parent=1 // loop_header
      %s14 = sphi 0, %s18
      %p15 = scmp.ge.s32.totalorder %s14, 4
      %s24 = sphi 0, %s26
      %s27 = sphi 0, %s24
      %s28 = sphi 0, %s27
      %s44 = sphi 0, %s28
      %s48 = sphi 0, %s48
      %s50 = sphi 0, %s48
      %s51 = sphi 0, %s50
      %s65 = sphi 0, %s51
      %s69 = sphi 0, %s69
      %s71 = sphi 0, %s69
      %s72 = sphi 0, %s71
      %s86 = sphi 0, %s72
      %s90 = sphi 0, %s90
      %s92 = sphi 0, %s90
      %s93 = sphi 0, %s92
      %s107 = sphi 0, %s93
      %s111 = sphi 0, %s111
      %s113 = sphi 0, %s111
      %s114 = sphi 0, %s113
      %s128 = sphi 0, %s114
      %s134 = sphi 0, %s136
      %s137 = sphi 0, %s134
      %s138 = sphi 0, %s137
      %s154 = sphi 0, %s138
    $region4: #{tpu_custom_call.1} parent=1 // loop_header_branch
      %17 = sbr.rel (%p15) target = $region8
    $region5: #{tpu_custom_call.1} parent=1 // loop_body
      %s19 = ssub.s32 %s14, 1
      %s20 = ssub.s32 %s14, 2
      %s21 = sadd.s32 %s14, 1
      %s22 = ssub.s32 %s14, %s21
      %p23 = scmp.eq.s32.totalorder %s22, 0
      %s25 = sadd.s32 %s24, 1
      %s26 = scalar_select %p23, %s24, %s25
      %p29 = pneg %p23
      %p30 = scmp.eq.s32.totalorder %s14, 1
      %p31 = por %p29, %p30
      %p32 = scmp.ne.s32.totalorder %s24, %s27
      %p33 = scmp.eq.s32.totalorder %s14, 0
      %p34 = por %p32, %p33
      %p35 = scmp.ne.s32.totalorder %s24, %s27
      %p36 = scmp.eq.s32.totalorder %s19, 1
      %p37 = por %p35, %p36
      %p38 = scmp.ne.s32.totalorder %s27, %s28
      %p39 = scmp.eq.s32.totalorder %s19, 0
      %p40 = por %p38, %p39
      %p41 = scmp.ne.s32.totalorder %s27, %s28
      %p42 = scmp.eq.s32.totalorder %s20, 1
      %p43 = por %p41, %p42
      %p45 = scmp.ne.s32.totalorder %s28, %s44
      %p46 = scmp.eq.s32.totalorder %s20, 0
      %p47 = por %p45, %p46
      %s49 = sadd.s32 %s48, 1
      %p52 = scmp.eq.s32.totalorder %s14, 1
      %p53 = scmp.ne.s32.totalorder %s48, %s50
      %p54 = scmp.eq.s32.totalorder %s14, 0
      %p55 = por %p53, %p54
      %p56 = scmp.ne.s32.totalorder %s48, %s50
      %p57 = scmp.eq.s32.totalorder %s19, 1
      %p58 = por %p56, %p57
      %p59 = scmp.ne.s32.totalorder %s50, %s51
      %p60 = scmp.eq.s32.totalorder %s19, 0
      %p61 = por %p59, %p60
      %p62 = scmp.ne.s32.totalorder %s50, %s51
      %p63 = scmp.eq.s32.totalorder %s20, 1
      %p64 = por %p62, %p63
      %p66 = scmp.ne.s32.totalorder %s51, %s65
      %p67 = scmp.eq.s32.totalorder %s20, 0
      %p68 = por %p66, %p67
      %s70 = sadd.s32 %s69, 1
      %p73 = scmp.eq.s32.totalorder %s14, 1
      %p74 = scmp.ne.s32.totalorder %s69, %s71
      %p75 = scmp.eq.s32.totalorder %s14, 0
      %p76 = por %p74, %p75
      %p77 = scmp.ne.s32.totalorder %s69, %s71
      %p78 = scmp.eq.s32.totalorder %s19, 1
      %p79 = por %p77, %p78
      %p80 = scmp.ne.s32.totalorder %s71, %s72
      %p81 = scmp.eq.s32.totalorder %s19, 0
      %p82 = por %p80, %p81
      %p83 = scmp.ne.s32.totalorder %s71, %s72
      %p84 = scmp.eq.s32.totalorder %s20, 1
      %p85 = por %p83, %p84
      %p87 = scmp.ne.s32.totalorder %s72, %s86
      %p88 = scmp.eq.s32.totalorder %s20, 0
      %p89 = por %p87, %p88
      %s91 = sadd.s32 %s90, 1
      %p94 = scmp.eq.s32.totalorder %s14, 1
      %p95 = scmp.ne.s32.totalorder %s90, %s92
      %p96 = scmp.eq.s32.totalorder %s14, 0
      %p97 = por %p95, %p96
      %p98 = scmp.ne.s32.totalorder %s90, %s92
      %p99 = scmp.eq.s32.totalorder %s19, 1
      %p100 = por %p98, %p99
      %p101 = scmp.ne.s32.totalorder %s92, %s93
      %p102 = scmp.eq.s32.totalorder %s19, 0
      %p103 = por %p101, %p102
      %p104 = scmp.ne.s32.totalorder %s92, %s93
      %p105 = scmp.eq.s32.totalorder %s20, 1
      %p106 = por %p104, %p105
      %p108 = scmp.ne.s32.totalorder %s93, %s107
      %p109 = scmp.eq.s32.totalorder %s20, 0
      %p110 = por %p108, %p109
      %s112 = sadd.s32 %s111, 1
      %p115 = scmp.eq.s32.totalorder %s14, 1
      %p116 = scmp.ne.s32.totalorder %s111, %s113
      %p117 = scmp.eq.s32.totalorder %s14, 0
      %p118 = por %p116, %p117
      %p119 = scmp.ne.s32.totalorder %s111, %s113
      %p120 = scmp.eq.s32.totalorder %s19, 1
      %p121 = por %p119, %p120
      %p122 = scmp.ne.s32.totalorder %s113, %s114
      %p123 = scmp.eq.s32.totalorder %s19, 0
      %p124 = por %p122, %p123
      %p125 = scmp.ne.s32.totalorder %s113, %s114
      %p126 = scmp.eq.s32.totalorder %s20, 1
      %p127 = por %p125, %p126
      %p129 = scmp.ne.s32.totalorder %s114, %s128
      %p130 = scmp.eq.s32.totalorder %s20, 0
      %p131 = por %p129, %p130
      %s132 = ssub.s32 %s14, %s21
      %p133 = scmp.eq.s32.totalorder %s132, 0
      %s135 = sadd.s32 %s134, 1
      %s136 = scalar_select %p133, %s134, %s135
      %p139 = pneg %p133
      %p140 = scmp.eq.s32.totalorder %s14, 1
      %p141 = por %p139, %p140
      %p142 = scmp.ne.s32.totalorder %s134, %s137
      %p143 = scmp.eq.s32.totalorder %s14, 0
      %p144 = por %p142, %p143
      %p145 = scmp.ne.s32.totalorder %s134, %s137
      %p146 = scmp.eq.s32.totalorder %s19, 1
      %p147 = por %p145, %p146
      %p148 = scmp.ne.s32.totalorder %s137, %s138
      %p149 = scmp.eq.s32.totalorder %s19, 0
      %p150 = por %p148, %p149
      %p151 = scmp.ne.s32.totalorder %s137, %s138
      %p152 = scmp.eq.s32.totalorder %s20, 1
      %p153 = por %p151, %p152
      %p155 = scmp.ne.s32.totalorder %s138, %s154
      %p156 = scmp.eq.s32.totalorder %s20, 0
      %p157 = por %p155, %p156
      %p158 = scmp.le.s32.totalorder 1, %s14
      %p159 = scmp.lt.s32.totalorder %s14, 3
      %p160 = pnand %p158, %p159
      %p161 = pneg %p160
      // Predicated region
      $region9: #{tpu_custom_call.1} parent=5 // pred_check
        _
      $region10: #{tpu_custom_call.1} parent=5 // pred_check_branch
        %163 = sbr.rel (%p160) target = $region12
      $region11: #{tpu_custom_call.1} parent=5 // pred_region
        %s164 = ssub.s32 %s14, 1
        // Predicated region
        $region13: #{tpu_custom_call.1} parent=11 // pred_check
          %p165 = pneg %p61
        $region14: #{tpu_custom_call.1} parent=11 // pred_check_branch
          %167 = sbr.rel (%p165) target = $region16
        $region15: #{tpu_custom_call.1} parent=11 // pred_region
          _
        $region16: #{tpu_custom_call.1} parent=11 // pred_fallthru
          _
        // Predicated region
        $region17: #{tpu_custom_call.1} parent=11 // pred_check
          %p168 = pneg %p82
        $region18: #{tpu_custom_call.1} parent=11 // pred_check_branch
          %170 = sbr.rel (%p168) target = $region20
        $region19: #{tpu_custom_call.1} parent=11 // pred_region
          _
        $region20: #{tpu_custom_call.1} parent=11 // pred_fallthru
          _
        // Predicated region
        $region21: #{tpu_custom_call.1} parent=11 // pred_check
          %p171 = pneg %p103
        $region22: #{tpu_custom_call.1} parent=11 // pred_check_branch
          %173 = sbr.rel (%p171) target = $region24
        $region23: #{tpu_custom_call.1} parent=11 // pred_region
          _
        $region24: #{tpu_custom_call.1} parent=11 // pred_fallthru
          _
        // Predicated region
        $region25: #{tpu_custom_call.1} parent=11 // pred_check
          %p174 = pneg %p124
        $region26: #{tpu_custom_call.1} parent=11 // pred_check_branch
          %176 = sbr.rel (%p174) target = $region28
        $region27: #{tpu_custom_call.1} parent=11 // pred_region
          _
        $region28: #{tpu_custom_call.1} parent=11 // pred_fallthru
          _
      $region12: #{tpu_custom_call.1} parent=5 // pred_fallthru
        _
      %p177 = scmp.lt.s32.totalorder %s14, 2
      // Predicated region
      $region29: #{tpu_custom_call.1} parent=5 // pred_check
        %p178 = pneg %p177
      $region30: #{tpu_custom_call.1} parent=5 // pred_check_branch
        %180 = sbr.rel (%p178) target = $region32
      $region31: #{tpu_custom_call.1} parent=5 // pred_region
        // Predicated region
        $region33: #{tpu_custom_call.1} parent=31 // pred_check
          %p181 = pneg %p34
        $region34: #{tpu_custom_call.1} parent=31 // pred_check_branch
          %183 = sbr.rel (%p181) target = $region36
        $region35: #{tpu_custom_call.1} parent=31 // pred_region
          %p184 = scmp.lt.s32.totalorder %s14, 1
          %s185 = scalar_select %p184, %s14, 1
          %s186 = smul.addr %s185, 8
          %s187 = scalar_lea.vmem %s0, %s186
        $region36: #{tpu_custom_call.1} parent=31 // pred_fallthru
          _
      $region32: #{tpu_custom_call.1} parent=5 // pred_fallthru
        _
      %p188 = scmp.le.s32.totalorder 1, %s14
      %p189 = scmp.lt.s32.totalorder %s14, 3
      %p190 = pnand %p188, %p189
      %p191 = pneg %p190
      // Predicated region
      $region37: #{tpu_custom_call.1} parent=5 // pred_check
        _
      $region38: #{tpu_custom_call.1} parent=5 // pred_check_branch
        %193 = sbr.rel (%p190) target = $region40
      $region39: #{tpu_custom_call.1} parent=5 // pred_region
        %s194 = ssub.s32 %s14, 1
        %p195 = scmp.lt.s32.totalorder %s19, 1
        %s196 = scalar_select %p195, %s19, 1
        %s197 = smul.addr %s196, 8
        %s198 = scalar_lea.vmem %s0, %s197
        %p199 = pneg %p40
        %p200 = pneg %p37
        %p201 = pneg %p61
        %p202 = pneg %p58
        %p203 = pneg %p82
        %p204 = pneg %p79
        %p205 = pneg %p103
        %p206 = pneg %p100
        %p207 = pneg %p124
        %p208 = pneg %p121
        %p209 = pneg %p150
        %p210 = pneg %p147
        %s211 = sand.u32 %s137, 1
        %s212 = scalar_lea.sflag [#allocation3], %s211
        %s213 = sand.u32 %s137, 1
        %s214 = smul.addr %s213, 8
        %s215 = scalar_lea.vmem [#allocation2], %s214
        %p216 = scmp.lt.s32.totalorder %s19, 1
        %s217 = scalar_select %p216, %s19, 1
        %s218 = smul.addr %s217, 8
        %s219 = scalar_lea.vmem %s0, %s218
        %v220 = vld [vmem:[%s219] sm:$0xff]
        %v221 = vld [vmem:[%s1] sm:$0xff]
        %v222 = vld [vmem:[%s1 + $0x8] sm:$0xff]
        %v223 = vld [vmem:[%s1 + $0x10] sm:$0xff]
        %v224 = vld [vmem:[%s1 + $0x18] sm:$0xff]
        %vm225 = vcmask 261120
        %v227 = vsel %vm225, %v220, 0
        %229 = vmatprep.subr.mxu0 0.0
        %230 = vmatpush1.msra.mxu0 %v221
        %231 = vmatprep.subr.mxu0 0.0
        %232 = vmatpush1.msra.mxu0 %v222
        %233 = vmatprep.subr.mxu0 0.0
        %234 = vmatpush1.msra.mxu0 %v223
        %235 = vmatprep.subr.mxu0 0.0
        %236 = vmatpush1.msra.mxu0 %v224
        %237 = vmatprep.subr.mxu0 0.0
        %238 = vmatpush1.msra.mxu0 0.0
        %239 = vmatprep.subr.mxu0 0.0
        %240 = vmatpush1.msra.mxu0 0.0
        %241 = vmatprep.subr.mxu0 0.0
        %242 = vmatpush1.msra.mxu0 0.0
        %243 = vmatprep.subr.mxu0 0.0
        %244 = vmatpush1.msra.mxu0 0.0
        %245 = vmatprep.subr.mxu0 0.0
        %246 = vmatpush1.msra.mxu0 0.0
        %247 = vmatprep.subr.mxu0 0.0
        %248 = vmatpush1.msra.mxu0 0.0
        %249 = vmatprep.subr.mxu0 0.0
        %250 = vmatpush1.msra.mxu0 0.0
        %251 = vmatprep.subr.mxu0 0.0
        %252 = vmatpush1.msra.mxu0 0.0
        %253 = vmatprep.subr.mxu0 0.0
        %254 = vmatpush1.msra.mxu0 0.0
        %255 = vmatprep.subr.mxu0 0.0
        %256 = vmatpush1.msra.mxu0 0.0
        %257 = vmatprep.subr.mxu0 0.0
        %258 = vmatpush1.msra.mxu0 0.0
        %259 = vmatprep.subr.mxu0 0.0
        %260 = vmatpush1.msra.mxu0 0.0
        %261 = vmatprep.subr.mxu0 0.0
        %262 = vmatpush1.msra.mxu0 0.0
        %263 = vmatprep.subr.mxu0 0.0
        %264 = vmatpush1.msra.mxu0 0.0
        %265 = vmatprep.subr.mxu0 0.0
        %266 = vmatpush1.msra.mxu0 0.0
        %267 = vmatprep.subr.mxu0 0.0
        %268 = vmatpush1.msra.mxu0 0.0
        %269 = vmatprep.subr.mxu0 0.0
        %270 = vmatpush1.msra.mxu0 0.0
        %271 = vmatprep.subr.mxu0 0.0
        %272 = vmatpush1.msra.mxu0 0.0
        %273 = vmatprep.subr.mxu0 0.0
        %274 = vmatpush1.msra.mxu0 0.0
        %275 = vmatprep.subr.mxu0 0.0
        %276 = vmatpush1.msra.mxu0 0.0
        %277 = vmatprep.subr.mxu0 0.0
        %278 = vmatpush1.msra.mxu0 0.0
        %279 = vmatprep.subr.mxu0 0.0
        %280 = vmatpush1.msra.mxu0 0.0
        %281 = vmatprep.subr.mxu0 0.0
        %282 = vmatpush1.msra.mxu0 0.0
        %283 = vmatprep.subr.mxu0 0.0
        %284 = vmatpush1.msra.mxu0 0.0
        %285 = vmatprep.subr.mxu0 0.0
        %286 = vmatpush1.msra.mxu0 0.0
        %287 = vmatprep.subr.mxu0 0.0
        %288 = vmatpush1.msra.mxu0 0.0
        %289 = vmatprep.subr.mxu0 0.0
        %290 = vmatpush1.msra.mxu0 0.0
        %291 = vmatprep.subr.mxu0 0.0
        %292 = vmatpush1.msra.mxu0 0.0
        %293 = vmatprep.mubr.f32.mxu0 0.0
        %294 = vmatmul.mubr.f32.gmra.mrb[0].mxu0 %v227
        %v295 = vpop.f32.mrb[0].mxu0
        %v296 = vadd.f32 0.0, %v295
        %v297 = vpop.f32.mrb[0].mxu0
        %298 = vdwg.mxu0
        %v299 = vld [vmem:[%s2] sm:$0xff]
        %v300 = vld [vmem:[%s3] sm:$0xff]
        %v301 = vmul.f32 %v296, %v299
        %303 = vrot.lane.b32.xlu0 %v300, 8
        %v304 = vpop.permute.xlu0 %303
        %v306 = vmul.f32 %v296, %v304
        %308 = vrot.lane.b32.xlu0 %v306, 120
        %v309 = vpop.permute.xlu0 %308
        %v311 = vsub.f32 %v301, %v309
        %v312 = vmul.f32 %v296, %v300
        %314 = vrot.lane.b32.xlu0 %v299, 8
        %v315 = vpop.permute.xlu0 %314
        %v317 = vmul.f32 %v296, %v315
        %319 = vrot.lane.b32.xlu0 %v317, 120
        %v320 = vpop.permute.xlu0 %319
        %v322 = vadd.f32 %v312, %v320
        %324 = vrot.lane.b32.xlu0 %v322, 8
        %v325 = vpop.permute.xlu0 %324
        %vm327 = vcmask 64512
        %v328 = vsel %vm327, %v311, %v325
        %329 = vrot.lane.b32.xlu0 %v299, 16
        %v330 = vpop.permute.xlu0 %329
        %v332 = vmul.f32 %v296, %v330
        %333 = vrot.lane.b32.xlu0 %v300, 24
        %v334 = vpop.permute.xlu0 %333
        %v336 = vmul.f32 %v296, %v334
        %338 = vrot.lane.b32.xlu0 %v336, 120
        %v339 = vpop.permute.xlu0 %338
        %v341 = vsub.f32 %v332, %v339
        %342 = vrot.lane.b32.xlu0 %v300, 16
        %v343 = vpop.permute.xlu0 %342
        %v345 = vmul.f32 %v296, %v343
        %346 = vrot.lane.b32.xlu0 %v299, 24
        %v347 = vpop.permute.xlu0 %346
        %v349 = vmul.f32 %v296, %v347
        %351 = vrot.lane.b32.xlu0 %v349, 120
        %v352 = vpop.permute.xlu0 %351
        %v354 = vadd.f32 %v345, %v352
        %356 = vrot.lane.b32.xlu0 %v341, 112
        %v357 = vpop.permute.xlu0 %356
        %360 = vrot.lane.b32.xlu0 %v354, 120
        %v361 = vpop.permute.xlu0 %360
        %v363 = vsel %vm327, %v357, %v361
        %364 = vrot.lane.b32.xlu0 %v299, 32
        %v365 = vpop.permute.xlu0 %364
        %v367 = vmul.f32 %v296, %v365
        %368 = vrot.lane.b32.xlu0 %v300, 40
        %v369 = vpop.permute.xlu0 %368
        %v371 = vmul.f32 %v296, %v369
        %373 = vrot.lane.b32.xlu0 %v371, 120
        %v374 = vpop.permute.xlu0 %373
        %v376 = vsub.f32 %v367, %v374
        %377 = vrot.lane.b32.xlu0 %v300, 32
        %v378 = vpop.permute.xlu0 %377
        %v380 = vmul.f32 %v296, %v378
        %381 = vrot.lane.b32.xlu0 %v299, 40
        %v382 = vpop.permute.xlu0 %381
        %v384 = vmul.f32 %v296, %v382
        %386 = vrot.lane.b32.xlu0 %v384, 120
        %v387 = vpop.permute.xlu0 %386
        %v389 = vadd.f32 %v380, %v387
        %391 = vrot.lane.b32.xlu0 %v376, 96
        %v392 = vpop.permute.xlu0 %391
        %395 = vrot.lane.b32.xlu0 %v389, 104
        %v396 = vpop.permute.xlu0 %395
        %v398 = vsel %vm327, %v392, %v396
        %399 = vrot.lane.b32.xlu0 %v299, 48
        %v400 = vpop.permute.xlu0 %399
        %v402 = vmul.f32 %v296, %v400
        %403 = vrot.lane.b32.xlu0 %v300, 56
        %v404 = vpop.permute.xlu0 %403
        %v406 = vmul.f32 %v296, %v404
        %408 = vrot.lane.b32.xlu0 %v406, 120
        %v409 = vpop.permute.xlu0 %408
        %v411 = vsub.f32 %v402, %v409
        %412 = vrot.lane.b32.xlu0 %v300, 48
        %v413 = vpop.permute.xlu0 %412
        %v415 = vmul.f32 %v296, %v413
        %416 = vrot.lane.b32.xlu0 %v299, 56
        %v417 = vpop.permute.xlu0 %416
        %v419 = vmul.f32 %v296, %v417
        %421 = vrot.lane.b32.xlu0 %v419, 120
        %v422 = vpop.permute.xlu0 %421
        %v424 = vadd.f32 %v415, %v422
        %426 = vrot.lane.b32.xlu0 %v411, 80
        %v427 = vpop.permute.xlu0 %426
        %430 = vrot.lane.b32.xlu0 %v424, 88
        %v431 = vpop.permute.xlu0 %430
        %v433 = vsel %vm327, %v427, %v431
        %434 = vrot.lane.b32.xlu0 %v299, 64
        %v435 = vpop.permute.xlu0 %434
        %v437 = vmul.f32 %v296, %v435
        %438 = vrot.lane.b32.xlu0 %v300, 72
        %v439 = vpop.permute.xlu0 %438
        %v441 = vmul.f32 %v296, %v439
        %443 = vrot.lane.b32.xlu0 %v441, 120
        %v444 = vpop.permute.xlu0 %443
        %v446 = vsub.f32 %v437, %v444
        %447 = vrot.lane.b32.xlu0 %v300, 64
        %v448 = vpop.permute.xlu0 %447
        %v450 = vmul.f32 %v296, %v448
        %451 = vrot.lane.b32.xlu0 %v299, 72
        %v452 = vpop.permute.xlu0 %451
        %v454 = vmul.f32 %v296, %v452
        %456 = vrot.lane.b32.xlu0 %v454, 120
        %v457 = vpop.permute.xlu0 %456
        %v459 = vadd.f32 %v450, %v457
        %461 = vrot.lane.b32.xlu0 %v446, 64
        %v462 = vpop.permute.xlu0 %461
        %465 = vrot.lane.b32.xlu0 %v459, 72
        %v466 = vpop.permute.xlu0 %465
        %v468 = vsel %vm327, %v462, %v466
        %469 = vrot.lane.b32.xlu0 %v299, 80
        %v470 = vpop.permute.xlu0 %469
        %v472 = vmul.f32 %v296, %v470
        %473 = vrot.lane.b32.xlu0 %v300, 88
        %v474 = vpop.permute.xlu0 %473
        %v476 = vmul.f32 %v296, %v474
        %478 = vrot.lane.b32.xlu0 %v476, 120
        %v479 = vpop.permute.xlu0 %478
        %v481 = vsub.f32 %v472, %v479
        %482 = vrot.lane.b32.xlu0 %v300, 80
        %v483 = vpop.permute.xlu0 %482
        %v485 = vmul.f32 %v296, %v483
        %486 = vrot.lane.b32.xlu0 %v299, 88
        %v487 = vpop.permute.xlu0 %486
        %v489 = vmul.f32 %v296, %v487
        %491 = vrot.lane.b32.xlu0 %v489, 120
        %v492 = vpop.permute.xlu0 %491
        %v494 = vadd.f32 %v485, %v492
        %496 = vrot.lane.b32.xlu0 %v481, 48
        %v497 = vpop.permute.xlu0 %496
        %500 = vrot.lane.b32.xlu0 %v494, 56
        %v501 = vpop.permute.xlu0 %500
        %v503 = vsel %vm327, %v497, %v501
        %v504 = vmul.f32 %v328, %v468
        %vm505 = vcmask 130048
        %v506 = vsel %vm505, %v504, 0.0
        %507 = vadd.xlane.f32.xlu0 %v506
        %v508 = vpop.xlane.xlu0 %507
        %v509 = vmul.f32 %v508, 0.25
        %v510 = vmul.f32 %v328, %v503
        %v511 = vsel %vm505, %v510, 0.0
        %512 = vadd.xlane.f32.xlu0 %v511
        %v513 = vpop.xlane.xlu0 %512
        %v514 = vmul.f32 %v513, 0.25
        %vm515 = vcmask 15360
        %v516 = vsel %vm515, %v509, %v514
        %vm517 = vcmask 23552
        %v518 = vsel %vm517, %v516, %v514
        %vm519 = vcmask 31744
        %v520 = vsel %vm519, %v518, -inf
        %521 = vmax.xlane.f32.xlu0 %v520
        %v522 = vpop.xlane.xlu0 %521
        %v523 = vsub.f32 %v518, %v522
        %v524 = vmul.f32 %v523, 1.442695
        %v525 = vpow.pop %v524
        %v526 = vsel %vm519, %v525, 0.0
        %527 = vadd.xlane.f32.xlu0 %v526
        %v528 = vpop.xlane.xlu0 %527
        %v529 = vrcp.pop %v528
        %v530 = vmul.f32 %v525, %v529
        %532 = vset.pattern.permute.xlu0 0
        %533 = vperm.xlu0 %532, %v530
        %v534 = vpop.permute.xlu0 %533
        %v536 = vmul.f32 %v534, %v296
        %v537 = vadd.f32 %v536, 0.0
        %538 = vset.pattern.permute.xlu0 1
        %539 = vperm.xlu0 %538, %v530
        %v540 = vpop.permute.xlu0 %539
        %v542 = vmul.f32 %v540, %v296
        %v543 = vadd.f32 %v537, %v542
        %544 = vset.pattern.permute.xlu0 2
        %545 = vperm.xlu0 %544, %v530
        %v546 = vpop.permute.xlu0 %545
        %v548 = vmul.f32 %v546, %v296
        %550 = vrot.lane.b32.xlu0 %v548, 112
        %v551 = vpop.permute.xlu0 %550
        %v553 = vadd.f32 %v543, %v551
        %554 = vset.pattern.permute.xlu0 3
        %555 = vperm.xlu0 %554, %v530
        %v556 = vpop.permute.xlu0 %555
        %v558 = vmul.f32 %v556, %v296
        %560 = vrot.lane.b32.xlu0 %v558, 112
        %v561 = vpop.permute.xlu0 %560
        %v563 = vadd.f32 %v553, %v561
        %v564 = vmul.f32 %v363, %v468
        %v565 = vsel %vm505, %v564, 0.0
        %566 = vadd.xlane.f32.xlu0 %v565
        %v567 = vpop.xlane.xlu0 %566
        %v568 = vmul.f32 %v567, 0.25
        %v569 = vmul.f32 %v363, %v503
        %v570 = vsel %vm505, %v569, 0.0
        %571 = vadd.xlane.f32.xlu0 %v570
        %v572 = vpop.xlane.xlu0 %571
        %v573 = vmul.f32 %v572, 0.25
        %v574 = vsel %vm515, %v568, %v573
        %v575 = vsel %vm517, %v574, %v573
        %v576 = vsel %vm519, %v575, -inf
        %577 = vmax.xlane.f32.xlu0 %v576
        %v578 = vpop.xlane.xlu0 %577
        %v579 = vsub.f32 %v575, %v578
        %v580 = vmul.f32 %v579, 1.442695
        %v581 = vpow.pop %v580
        %v582 = vsel %vm519, %v581, 0.0
        %583 = vadd.xlane.f32.xlu0 %v582
        %v584 = vpop.xlane.xlu0 %583
        %v585 = vrcp.pop %v584
        %v586 = vmul.f32 %v581, %v585
        %588 = vset.pattern.permute.xlu0 0
        %589 = vperm.xlu0 %588, %v586
        %v590 = vpop.permute.xlu0 %589
        %v592 = vmul.f32 %v590, %v296
        %v593 = vadd.f32 %v592, 0.0
        %594 = vset.pattern.permute.xlu0 1
        %595 = vperm.xlu0 %594, %v586
        %v596 = vpop.permute.xlu0 %595
        %v598 = vmul.f32 %v596, %v296
        %v599 = vadd.f32 %v593, %v598
        %600 = vset.pattern.permute.xlu0 2
        %601 = vperm.xlu0 %600, %v586
        %v602 = vpop.permute.xlu0 %601
        %v604 = vmul.f32 %v602, %v296
        %606 = vrot.lane.b32.xlu0 %v604, 112
        %v607 = vpop.permute.xlu0 %606
        %v609 = vadd.f32 %v599, %v607
        %610 = vset.pattern.permute.xlu0 3
        %611 = vperm.xlu0 %610, %v586
        %v612 = vpop.permute.xlu0 %611
        %v614 = vmul.f32 %v612, %v296
        %616 = vrot.lane.b32.xlu0 %v614, 112
        %v617 = vpop.permute.xlu0 %616
        %v619 = vadd.f32 %v609, %v617
        %v620 = vmul.f32 %v398, %v468
        %v621 = vsel %vm505, %v620, 0.0
        %622 = vadd.xlane.f32.xlu0 %v621
        %v623 = vpop.xlane.xlu0 %622
        %v624 = vmul.f32 %v623, 0.25
        %v625 = vmul.f32 %v398, %v503
        %v626 = vsel %vm505, %v625, 0.0
        %627 = vadd.xlane.f32.xlu0 %v626
        %v628 = vpop.xlane.xlu0 %627
        %v629 = vmul.f32 %v628, 0.25
        %v630 = vsel %vm515, %v624, %v629
        %v631 = vsel %vm517, %v630, %v629
        %v632 = vsel %vm519, %v631, -inf
        %633 = vmax.xlane.f32.xlu0 %v632
        %v634 = vpop.xlane.xlu0 %633
        %v635 = vsub.f32 %v631, %v634
        %v636 = vmul.f32 %v635, 1.442695
        %v637 = vpow.pop %v636
        %v638 = vsel %vm519, %v637, 0.0
        %639 = vadd.xlane.f32.xlu0 %v638
        %v640 = vpop.xlane.xlu0 %639
        %v641 = vrcp.pop %v640
        %v642 = vmul.f32 %v637, %v641
        %644 = vset.pattern.permute.xlu0 0
        %645 = vperm.xlu0 %644, %v642
        %v646 = vpop.permute.xlu0 %645
        %v648 = vmul.f32 %v646, %v296
        %v649 = vadd.f32 %v648, 0.0
        %650 = vset.pattern.permute.xlu0 1
        %651 = vperm.xlu0 %650, %v642
        %v652 = vpop.permute.xlu0 %651
        %v654 = vmul.f32 %v652, %v296
        %v655 = vadd.f32 %v649, %v654
        %656 = vset.pattern.permute.xlu0 2
        %657 = vperm.xlu0 %656, %v642
        %v658 = vpop.permute.xlu0 %657
        %v660 = vmul.f32 %v658, %v296
        %662 = vrot.lane.b32.xlu0 %v660, 112
        %v663 = vpop.permute.xlu0 %662
        %v665 = vadd.f32 %v655, %v663
        %666 = vset.pattern.permute.xlu0 3
        %667 = vperm.xlu0 %666, %v642
        %v668 = vpop.permute.xlu0 %667
        %v670 = vmul.f32 %v668, %v296
        %672 = vrot.lane.b32.xlu0 %v670, 112
        %v673 = vpop.permute.xlu0 %672
        %v675 = vadd.f32 %v665, %v673
        %v676 = vmul.f32 %v433, %v468
        %v677 = vsel %vm505, %v676, 0.0
        %678 = vadd.xlane.f32.xlu0 %v677
        %v679 = vpop.xlane.xlu0 %678
        %v680 = vmul.f32 %v679, 0.25
        %v681 = vmul.f32 %v433, %v503
        %v682 = vsel %vm505, %v681, 0.0
        %683 = vadd.xlane.f32.xlu0 %v682
        %v684 = vpop.xlane.xlu0 %683
        %v685 = vmul.f32 %v684, 0.25
        %v686 = vsel %vm515, %v680, %v685
        %v687 = vsel %vm517, %v686, %v685
        %v688 = vsel %vm519, %v687, -inf
        %689 = vmax.xlane.f32.xlu0 %v688
        %v690 = vpop.xlane.xlu0 %689
        %v691 = vsub.f32 %v687, %v690
        %v692 = vmul.f32 %v691, 1.442695
        %v693 = vpow.pop %v692
        %v694 = vsel %vm519, %v693, 0.0
        %695 = vadd.xlane.f32.xlu0 %v694
        %v696 = vpop.xlane.xlu0 %695
        %v697 = vrcp.pop %v696
        %v698 = vmul.f32 %v693, %v697
        %700 = vset.pattern.permute.xlu0 0
        %701 = vperm.xlu0 %700, %v698
        %v702 = vpop.permute.xlu0 %701
        %v704 = vmul.f32 %v702, %v296
        %v705 = vadd.f32 %v704, 0.0
        %706 = vset.pattern.permute.xlu0 1
        %707 = vperm.xlu0 %706, %v698
        %v708 = vpop.permute.xlu0 %707
        %v710 = vmul.f32 %v708, %v296
        %v711 = vadd.f32 %v705, %v710
        %712 = vset.pattern.permute.xlu0 2
        %713 = vperm.xlu0 %712, %v698
        %v714 = vpop.permute.xlu0 %713
        %v716 = vmul.f32 %v714, %v296
        %718 = vrot.lane.b32.xlu0 %v716, 112
        %v719 = vpop.permute.xlu0 %718
        %v721 = vadd.f32 %v711, %v719
        %722 = vset.pattern.permute.xlu0 3
        %723 = vperm.xlu0 %722, %v698
        %v724 = vpop.permute.xlu0 %723
        %v726 = vmul.f32 %v724, %v296
        %728 = vrot.lane.b32.xlu0 %v726, 112
        %v729 = vpop.permute.xlu0 %728
        %v731 = vadd.f32 %v721, %v729
        %733 = vrot.lane.b32.xlu0 %v563, 32
        %v734 = vpop.permute.xlu0 %733
        %737 = vrot.lane.b32.xlu0 %v619, 48
        %v738 = vpop.permute.xlu0 %737
        %741 = vrot.lane.b32.xlu0 %v675, 64
        %v742 = vpop.permute.xlu0 %741
        %745 = vrot.lane.b32.xlu0 %v731, 80
        %v746 = vpop.permute.xlu0 %745
        %v748 = vsel %vm505, %v734, %v738
        %v749 = vsel %vm225, %v748, %v742
        %vm750 = vcmask 392192
        %v751 = vsel %vm750, %v749, %v746
        %v752 = vld [vmem:[%s4] sm:$0xff]
        %v753 = vld [vmem:[%s4 + $0x8] sm:$0xff]
        %v754 = vld [vmem:[%s4 + $0x10] sm:$0xff]
        %v755 = vld [vmem:[%s4 + $0x18] sm:$0xff]
        %v756 = vld [vmem:[%s4 + $0x20] sm:$0xff]
        %v757 = vld [vmem:[%s4 + $0x28] sm:$0xff]
        %v758 = vld [vmem:[%s4 + $0x30] sm:$0xff]
        %v759 = vld [vmem:[%s4 + $0x38] sm:$0xff]
        %vm760 = vcmask 523264
        %v762 = vsel %vm760, %v751, 0
        %764 = vmatprep.subr.mxu0 0.0
        %765 = vmatpush1.msra.mxu0 %v752
        %766 = vmatprep.subr.mxu0 0.0
        %767 = vmatpush1.msra.mxu0 %v753
        %768 = vmatprep.subr.mxu0 0.0
        %769 = vmatpush1.msra.mxu0 %v754
        %770 = vmatprep.subr.mxu0 0.0
        %771 = vmatpush1.msra.mxu0 %v755
        %772 = vmatprep.subr.mxu0 0.0
        %773 = vmatpush1.msra.mxu0 %v756
        %774 = vmatprep.subr.mxu0 0.0
        %775 = vmatpush1.msra.mxu0 %v757
        %776 = vmatprep.subr.mxu0 0.0
        %777 = vmatpush1.msra.mxu0 %v758
        %778 = vmatprep.subr.mxu0 0.0
        %779 = vmatpush1.msra.mxu0 %v759
        %780 = vmatprep.subr.mxu0 0.0
        %781 = vmatpush1.msra.mxu0 0.0
        %782 = vmatprep.subr.mxu0 0.0
        %783 = vmatpush1.msra.mxu0 0.0
        %784 = vmatprep.subr.mxu0 0.0
        %785 = vmatpush1.msra.mxu0 0.0
        %786 = vmatprep.subr.mxu0 0.0
        %787 = vmatpush1.msra.mxu0 0.0
        %788 = vmatprep.subr.mxu0 0.0
        %789 = vmatpush1.msra.mxu0 0.0
        %790 = vmatprep.subr.mxu0 0.0
        %791 = vmatpush1.msra.mxu0 0.0
        %792 = vmatprep.subr.mxu0 0.0
        %793 = vmatpush1.msra.mxu0 0.0
        %794 = vmatprep.subr.mxu0 0.0
        %795 = vmatpush1.msra.mxu0 0.0
        %796 = vmatprep.subr.mxu0 0.0
        %797 = vmatpush1.msra.mxu0 0.0
        %798 = vmatprep.subr.mxu0 0.0
        %799 = vmatpush1.msra.mxu0 0.0
        %800 = vmatprep.subr.mxu0 0.0
        %801 = vmatpush1.msra.mxu0 0.0
        %802 = vmatprep.subr.mxu0 0.0
        %803 = vmatpush1.msra.mxu0 0.0
        %804 = vmatprep.subr.mxu0 0.0
        %805 = vmatpush1.msra.mxu0 0.0
        %806 = vmatprep.subr.mxu0 0.0
        %807 = vmatpush1.msra.mxu0 0.0
        %808 = vmatprep.subr.mxu0 0.0
        %809 = vmatpush1.msra.mxu0 0.0
        %810 = vmatprep.subr.mxu0 0.0
        %811 = vmatpush1.msra.mxu0 0.0
        %812 = vmatprep.subr.mxu0 0.0
        %813 = vmatpush1.msra.mxu0 0.0
        %814 = vmatprep.subr.mxu0 0.0
        %815 = vmatpush1.msra.mxu0 0.0
        %816 = vmatprep.subr.mxu0 0.0
        %817 = vmatpush1.msra.mxu0 0.0
        %818 = vmatprep.subr.mxu0 0.0
        %819 = vmatpush1.msra.mxu0 0.0
        %820 = vmatprep.subr.mxu0 0.0
        %821 = vmatpush1.msra.mxu0 0.0
        %822 = vmatprep.subr.mxu0 0.0
        %823 = vmatpush1.msra.mxu0 0.0
        %824 = vmatprep.subr.mxu0 0.0
        %825 = vmatpush1.msra.mxu0 0.0
        %826 = vmatprep.subr.mxu0 0.0
        %827 = vmatpush1.msra.mxu0 0.0
        %828 = vmatprep.mubr.f32.mxu0 0.0
        %829 = vmatmul.mubr.f32.gmra.mrb[0].mxu0 %v762
        %v830 = vpop.f32.mrb[0].mxu0
        %v831 = vadd.f32 0.0, %v830
        %v832 = vpop.f32.mrb[0].mxu0
        %833 = vdwg.mxu0
        %834 = vst.msk [vmem:[%s215] sm:$0xff] %vm225, %v831
        %s835 = sand.u32 %s137, 1
        %s836 = scalar_lea.sflag [#allocation3], %s835
        %s837 = sand.u32 %s137, 1
        %s838 = smul.addr %s837, 8
        %s839 = scalar_lea.vmem [#allocation2], %s838
        // Predicated region
        $region41: #{tpu_custom_call.1} parent=39 // pred_check
          %p840 = pneg %p147
        $region42: #{tpu_custom_call.1} parent=39 // pred_check_branch
          %842 = sbr.rel (%p840) target = $region44
        $region43: #{tpu_custom_call.1} parent=39 // pred_region
          %s844 = ssub.s32 128, 128
          %845 = vsyncadd %s836, %s844
          %s846 = smul.addr %s19, 128
          %s847 = scalar_lea.hbm %s5, %s846
          %s849 = sshll.u32 %s839, 4
          %s850 = int_to_ptr.vmem [resolvable:$true] %s849
          %852 = dma.vmem_to_hbm [thread:$0]  %s850, 128, %s847, %s836
        $region44: #{tpu_custom_call.1} parent=39 // pred_fallthru
          _
      $region40: #{tpu_custom_call.1} parent=5 // pred_fallthru
        _
      %p853 = scmp.le.s32.totalorder 2, %s14
      // Predicated region
      $region45: #{tpu_custom_call.1} parent=5 // pred_check
        %p854 = pneg %p853
      $region46: #{tpu_custom_call.1} parent=5 // pred_check_branch
        %856 = sbr.rel (%p854) target = $region48
      $region47: #{tpu_custom_call.1} parent=5 // pred_region
        %s857 = ssub.s32 %s14, 2
        // Predicated region
        $region49: #{tpu_custom_call.1} parent=47 // pred_check
          %p858 = pneg %p153
        $region50: #{tpu_custom_call.1} parent=47 // pred_check_branch
          %860 = sbr.rel (%p858) target = $region52
        $region51: #{tpu_custom_call.1} parent=47 // pred_region
          %s861 = sand.u32 %s138, 1
          %s862 = scalar_lea.sflag [#allocation3], %s861
          %s863 = sand.u32 %s138, 1
          %s864 = smul.addr %s863, 8
          %s865 = scalar_lea.vmem [#allocation2], %s864
          %866 = dma.done %s862, 128
        $region52: #{tpu_custom_call.1} parent=47 // pred_fallthru
          _
      $region48: #{tpu_custom_call.1} parent=5 // pred_fallthru
        _
    $region6: #{tpu_custom_call.1} parent=1 // loop_footer
      %s18 = sadd.s32 1, %s14
    $region7: #{tpu_custom_call.1} parent=1 // loop_footer_branch
      %13 = sbr.rel target = $region3
    $region8: #{tpu_custom_call.1} parent=1 // loop_exit
      _
    %867 = vsyncpa [#allocation3], 1
    %s868 = scalar_lea.sflag [#allocation3], 1
    %869 = vsyncpa %s868, 1

</llo_original>
